<compile_context>
chip_gen: v5e
topology: v5e:2x2
jax: 0.10.0
libtpu: 0.0.40
codegen_flags: <defaults>
</compile_context>

<pallas_src>
import functools

import jax
import jax.numpy as jnp
from jax import lax
from jax.experimental import pallas as pl
from jax.experimental.pallas import tpu as pltpu


def _mlp_kernel(x_ref, w_ref, o_ref):
    """One batch tile through the whole layer stack.

    x_ref : (TB, N)    f32 activations for this batch tile (VMEM)
    w_ref : (L, N, N)  bf16 weights, pre-transposed to (in, out) layout (VMEM)
    o_ref : (TB, N)    f32 output tile
    """
    num_layers = w_ref.shape[0]

    # Carry activations in bf16 (halves vreg/VMEM footprint); MXU accumulates
    # in f32 and ReLU runs on the f32 result.
    act0 = x_ref[...].astype(jnp.bfloat16)

    def layer(i, act):
        w = w_ref[i]  # (N_in, N_out) bf16, already transposed in the wrapper
        y = lax.dot_general(  # plain x @ W on the MXU, no RHS layout fixup
            act,
            w,
            dimension_numbers=(((1,), (0,)), ((), ())),
            preferred_element_type=jnp.float32,
        )
        return jnp.maximum(y, 0.0).astype(jnp.bfloat16)  # ReLU in f32, carry bf16

    # Fully unroll only shallow stacks; deep stacks stay rolled so big batch
    # tiles don't blow the 64-vreg budget.
    act = lax.fori_loop(0, num_layers, layer, act0, unroll=(num_layers <= 8))

    # TODO(synk): the PyTorch forward prints x.std() per layer and breaks early
    # on NaN; host-side printing / data-dependent early exit has no clean
    # Pallas equivalent and is intentionally not replicated.
    o_ref[...] = act.astype(o_ref.dtype)


def prepare_weights(weights):
    """One-time weight prep (call OUTSIDE the per-step forward).

    PyTorch stores Linear weights as (out, in).  Transpose to (in, out) and
    cast to bf16 in a single op, so the per-call HBM weight traffic really is
    halved and the kernel never needs an in-kernel transpose.
    """
    return jnp.transpose(weights, (0, 2, 1)).astype(jnp.bfloat16)


@functools.partial(jax.jit, static_argnames=("batch_tile",))
def mlp_forward(x, w_t_bf16, *, batch_tile=256):
    """x: (B, N) float32; w_t_bf16: (L, N, N) bf16 in (layer, in, out) layout."""
    B, N = x.shape
    L = w_t_bf16.shape[0]

    # Pad the batch to a multiple of the tile (min 16 rows: bf16 MXU LHS min
    # sublane tile).  Zero rows stay zero through ReLU(x @ W).
    tb = min(batch_tile, max(16, ((B + 15) // 16) * 16))
    Bp = ((B + tb - 1) // tb) * tb
    xp = jnp.pad(x, ((0, Bp - B), (0, 0))) if Bp != B else x
    grid = (Bp // tb,)

    # VMEM budget: double-buffered activation tiles + resident weight stack,
    # clamped to 48 MiB so it stays safe on v7x (64 MiB physical VMEM).
    vmem_needed = 2 * (2 * tb * N * 4) + 2 * (L * N * N * 2) + (1 << 20)
    vmem_limit = int(min(max(vmem_needed, 32 * 1024 * 1024), 48 * 1024 * 1024))

    out = pl.pallas_call(
        _mlp_kernel,
        out_shape=jax.ShapeDtypeStruct((Bp, N), x.dtype),
        grid=grid,
        in_specs=[
            pl.BlockSpec((tb, N), lambda b: (b, 0)),       # batch tile of activations
            pl.BlockSpec((L, N, N), lambda b: (0, 0, 0)),  # whole weight stack, VMEM resident
        ],
        out_specs=pl.BlockSpec((tb, N), lambda b: (b, 0)),
        compiler_params=pltpu.CompilerParams(
            # Batch tiles are independent -> "parallel" lets v7x shard the grid
            # across its 2 TensorCores (no-op on single-core v5e/v6e).
            dimension_semantics=("parallel",),
            vmem_limit_bytes=vmem_limit,
        ),
    )(xp, w_t_bf16)
    return out[:B] if Bp != B else out


def reference_forward_f32(x, weights):
    """Pure-JAX f32 reference mirroring the PyTorch forward (minus prints)."""
    for i in range(weights.shape[0]):
        x = x @ weights[i].T
        x = jnp.maximum(x, 0.0)
    return x


def reference_forward_bf16(x, weights):
    """Reference with the kernel's numerics: bf16 operands/carry, f32 accumulation."""
    w = jnp.transpose(weights, (0, 2, 1)).astype(jnp.bfloat16)
    act = x.astype(jnp.bfloat16)
    for i in range(weights.shape[0]):
        y = lax.dot_general(
            act,
            w[i],
            dimension_numbers=(((1,), (0,)), ((), ())),
            preferred_element_type=jnp.float32,
        )
        act = jnp.maximum(y, 0.0).astype(jnp.bfloat16)
    return act.astype(jnp.float32)


if __name__ == "__main__":
    NEURAL_NUM = 128   # neural_num
    LAYERS = 4         # layers
    BATCH = 16         # small, but meets the (16, 128) bf16 MXU LHS min tile

    key = jax.random.PRNGKey(0)
    kx, kw = jax.random.split(key)

    # Input: standard normal, like torch.randn((batch, neural_num)).
    x = jax.random.normal(kx, (BATCH, NEURAL_NUM), dtype=jnp.float32)

    # Deterministic Kaiming-normal init (fan_in mode, ReLU gain sqrt(2)),
    # matching nn.init.kaiming_normal_ for a (out, in) Linear weight.
    std = (2.0 / NEURAL_NUM) ** 0.5
    weights = std * jax.random.normal(
        kw, (LAYERS, NEURAL_NUM, NEURAL_NUM), dtype=jnp.float32
    )

    # One-time prep (transpose + bf16 cast) -- NOT repeated per forward call.
    w_prepped = jax.block_until_ready(prepare_weights(weights))

    out = jax.block_until_ready(mlp_forward(x, w_prepped))
    assert out.shape == (BATCH, NEURAL_NUM)

    # Tight check against a reference with identical (bf16-carry) numerics.
    ref_bf16 = reference_forward_bf16(x, weights)
    assert jnp.allclose(out, ref_bf16, atol=2e-2, rtol=2e-2), "mismatch vs bf16 reference"

    # Looser check against the full-f32 PyTorch-semantics reference
    # (bf16 weights/activations introduce small, depth-compounding error).
    ref_f32 = reference_forward_f32(x, weights)
    assert jnp.allclose(out, ref_f32, atol=1e-1, rtol=1e-1), "mismatch vs f32 reference"

    print("KERNEL_OK")
</pallas_src>

<mosaic_0001>
module attributes {stable_mosaic.version = 11 : i64} {
  func.func @_mlp_kernel(%arg0: i32, %arg1: memref<16x128xf32, #tpu.memory_space<vmem>>, %arg2: memref<4x128x128xbf16, #tpu.memory_space<vmem>>, %arg3: memref<16x128xf32, #tpu.memory_space<vmem>>) attributes {dimension_semantics = [#tpu.dimension_semantics<parallel>], iteration_bounds = array<i64: 1>, scalar_prefetch = 0 : i64, scratch_operands = 0 : i64, tpu.core_type = #tpu.core_type<tc>, window_params = [{transform_indices = @transform_0, window_bounds = array<i64: 16, 128>}, {pipeline_mode = #tpu.pipeline_mode<synchronous>, transform_indices = @transform_1, window_bounds = array<i64: 4, 128, 128>}, {transform_indices = @transform_2, window_bounds = array<i64: 16, 128>}]} {
    %c0 = arith.constant 0 : index
    %c0_0 = arith.constant 0 : index
    %0 = vector.load %arg1[%c0, %c0_0] : memref<16x128xf32, #tpu.memory_space<vmem>>, vector<16x128xf32>
    %1 = arith.truncf %0 : vector<16x128xf32> to vector<16x128xbf16>
    %c0_i32 = arith.constant 0 : i32
    %2 = arith.index_cast %c0_i32 : i32 to index
    %c0_1 = arith.constant 0 : index
    %c0_2 = arith.constant 0 : index
    %3 = vector.load %arg2[%2, %c0_1, %c0_2] : memref<4x128x128xbf16, #tpu.memory_space<vmem>>, vector<1x128x128xbf16>
    %4 = vector.shape_cast %3 : vector<1x128x128xbf16> to vector<128x128xbf16>
    %cst = arith.constant dense<0.000000e+00> : vector<16x128xf32>
    %5 = tpu.matmul %1, %4, %cst {dimension_numbers = #tpu.dot_dimension_numbers<[1], [0], [0], [1], [0, 0, 1, 1], [], []>} : vector<16x128xbf16>, vector<128x128xbf16>, vector<16x128xf32> -> vector<16x128xf32>
    %cst_3 = arith.constant 0.000000e+00 : f32
    %6 = vector.broadcast %cst_3 : f32 to vector<16x128xf32>
    %7 = arith.maximumf %5, %6 : vector<16x128xf32>
    %8 = arith.truncf %7 : vector<16x128xf32> to vector<16x128xbf16>
    %c1_i32 = arith.constant 1 : i32
    %9 = arith.index_cast %c1_i32 : i32 to index
    %c0_4 = arith.constant 0 : index
    %c0_5 = arith.constant 0 : index
    %10 = vector.load %arg2[%9, %c0_4, %c0_5] : memref<4x128x128xbf16, #tpu.memory_space<vmem>>, vector<1x128x128xbf16>
    %11 = vector.shape_cast %10 : vector<1x128x128xbf16> to vector<128x128xbf16>
    %cst_6 = arith.constant dense<0.000000e+00> : vector<16x128xf32>
    %12 = tpu.matmul %8, %11, %cst_6 {dimension_numbers = #tpu.dot_dimension_numbers<[1], [0], [0], [1], [0, 0, 1, 1], [], []>} : vector<16x128xbf16>, vector<128x128xbf16>, vector<16x128xf32> -> vector<16x128xf32>
    %cst_7 = arith.constant 0.000000e+00 : f32
    %13 = vector.broadcast %cst_7 : f32 to vector<16x128xf32>
    %14 = arith.maximumf %12, %13 : vector<16x128xf32>
    %15 = arith.truncf %14 : vector<16x128xf32> to vector<16x128xbf16>
    %c2_i32 = arith.constant 2 : i32
    %16 = arith.index_cast %c2_i32 : i32 to index
    %c0_8 = arith.constant 0 : index
    %c0_9 = arith.constant 0 : index
    %17 = vector.load %arg2[%16, %c0_8, %c0_9] : memref<4x128x128xbf16, #tpu.memory_space<vmem>>, vector<1x128x128xbf16>
    %18 = vector.shape_cast %17 : vector<1x128x128xbf16> to vector<128x128xbf16>
    %cst_10 = arith.constant dense<0.000000e+00> : vector<16x128xf32>
    %19 = tpu.matmul %15, %18, %cst_10 {dimension_numbers = #tpu.dot_dimension_numbers<[1], [0], [0], [1], [0, 0, 1, 1], [], []>} : vector<16x128xbf16>, vector<128x128xbf16>, vector<16x128xf32> -> vector<16x128xf32>
    %cst_11 = arith.constant 0.000000e+00 : f32
    %20 = vector.broadcast %cst_11 : f32 to vector<16x128xf32>
    %21 = arith.maximumf %19, %20 : vector<16x128xf32>
    %22 = arith.truncf %21 : vector<16x128xf32> to vector<16x128xbf16>
    %c3_i32 = arith.constant 3 : i32
    %23 = arith.index_cast %c3_i32 : i32 to index
    %c0_12 = arith.constant 0 : index
    %c0_13 = arith.constant 0 : index
    %24 = vector.load %arg2[%23, %c0_12, %c0_13] : memref<4x128x128xbf16, #tpu.memory_space<vmem>>, vector<1x128x128xbf16>
    %25 = vector.shape_cast %24 : vector<1x128x128xbf16> to vector<128x128xbf16>
    %cst_14 = arith.constant dense<0.000000e+00> : vector<16x128xf32>
    %26 = tpu.matmul %22, %25, %cst_14 {dimension_numbers = #tpu.dot_dimension_numbers<[1], [0], [0], [1], [0, 0, 1, 1], [], []>} : vector<16x128xbf16>, vector<128x128xbf16>, vector<16x128xf32> -> vector<16x128xf32>
    %cst_15 = arith.constant 0.000000e+00 : f32
    %27 = vector.broadcast %cst_15 : f32 to vector<16x128xf32>
    %28 = arith.maximumf %26, %27 : vector<16x128xf32>
    %29 = arith.truncf %28 : vector<16x128xf32> to vector<16x128xbf16>
    %c4_i32 = arith.constant 4 : i32
    %30 = arith.extf %29 : vector<16x128xbf16> to vector<16x128xf32>
    %c0_16 = arith.constant 0 : index
    %c0_17 = arith.constant 0 : index
    %31 = vector.load %arg3[%c0_16, %c0_17] : memref<16x128xf32, #tpu.memory_space<vmem>>, vector<16x128xf32>
    tpu.vector_store %arg3[%c0_16, %c0_17], %30 {strides = array<i32>} : memref<16x128xf32, #tpu.memory_space<vmem>>, vector<16x128xf32>,
    return
  }
  func.func @transform_0(%arg0: i32) -> (i32, i32) {
    %c0_i32 = arith.constant 0 : i32
    %c0_i32_0 = arith.constant 0 : i32
    return %arg0, %c0_i32 : i32, i32
  }
  func.func @transform_1(%arg0: i32) -> (i32, i32, i32) {
    %c0_i32 = arith.constant 0 : i32
    %c0_i32_0 = arith.constant 0 : i32
    %c0_i32_1 = arith.constant 0 : i32
    %c0_i32_2 = arith.constant 0 : i32
    return %c0_i32, %c0_i32_0, %c0_i32_1 : i32, i32, i32
  }
  func.func @transform_2(%arg0: i32) -> (i32, i32) {
    %c0_i32 = arith.constant 0 : i32
    %c0_i32_0 = arith.constant 0 : i32
    return %arg0, %c0_i32 : i32, i32
  }
}

</mosaic_0001>

<llo_original>
// kernel: mlp_forward.1
$region0: #{mlp_forward.1}
  #allocation0 [shape = 'u32[]', space=smem, size = 0x4, offset = 0x4, fixed_abs, tag = 'smem constant byte address 0x4 - core index']
  #allocation1 [shape = 'u32[72,128]{1,0:T(1,128)}', space=vmem, size = 0x9000, scoped, tag = 'internal scratch']
  %s0 = inlined_call_operand.hbm [shape: f32[16,128], index: 0, kind: input, shape index: {}]
  %s1 = inlined_call_operand.hbm [shape: bf16[4,128,128], index: 1, kind: input, shape index: {}]
  %s2 = inlined_call_operand.hbm [shape: f32[16,128], index: 2, kind: output, shape index: {}]
  %s3 = sld [smem:[#allocation0]]
  $region26: #{mlp_forward.1} parent=0
    _
  %s5 = ssub.s32 1, %s3
  %s6 = scalar_select 0, %s5, %s3
  $region1: #{mlp_forward.1} parent=0
    #allocation2 [shape = 'u8[8192]{0}', space=vmem, size = 0x2000, scoped, tag = 'input window, operand 0, single buffered']
    #allocation3 [shape = 's32[1]{0}', space=sflag, size = 0x4, scoped, tag = 'scoped memory for mlp_forward.1']
    #allocation4 [shape = 's32[1]{0}', space=sflag, size = 0x4, scoped, tag = 'scoped memory for mlp_forward.1']
    #allocation5 [shape = 'u8[131072]{0}', space=vmem, size = 0x20000, scoped, tag = 'input window, operand 1, single buffered']
    #allocation6 [shape = 's32[1]{0}', space=sflag, size = 0x4, scoped, tag = 'scoped memory for mlp_forward.1']
    #allocation7 [shape = 'u8[8192]{0}', space=vmem, size = 0x2000, scoped, tag = 'output window, operand 0, single buffered']
    %7 = vsyncpa [#allocation3], 0
    %8 = vsyncpa [#allocation6], 0
    %9 = vsyncpa [#allocation4], 0
    // Predicated region
    $region2: #{mlp_forward.1} parent=1 // pred_check
      _
    $region3: #{mlp_forward.1} parent=1 // pred_check_branch
      %11 = sbr.rel (0) target = $region5
    $region4: #{mlp_forward.1} parent=1 // pred_region
      %13 = vsyncadd [#allocation3], 0
      %s14 = sshll.u32 %s0, 4
      %s15 = int_to_ptr.hbm [resolvable:$true] %s14
      %s16 = sshll.u32 [#allocation2], 4
      %s17 = int_to_ptr.vmem [resolvable:$true] %s16
      %22 = dma.hbm_to_vmem [thread:$0]  %s15, 256, %s17, [#allocation3], 128, 128, 8
    $region5: #{mlp_forward.1} parent=1 // pred_fallthru
      _
    // Predicated region
    $region6: #{mlp_forward.1} parent=1 // pred_check
      _
    $region7: #{mlp_forward.1} parent=1 // pred_check_branch
      %24 = sbr.rel (0) target = $region9
    $region8: #{mlp_forward.1} parent=1 // pred_region
      %26 = vsyncadd [#allocation6], 0
      %s27 = sshll.u32 %s1, 4
      %s28 = int_to_ptr.hbm [resolvable:$true] %s27
      %s29 = sshll.u32 [#allocation5], 4
      %s30 = int_to_ptr.vmem [resolvable:$true] %s29
      %35 = dma.hbm_to_vmem [thread:$0]  %s28, 4096, %s30, [#allocation6], 64, 64, 4
    $region9: #{mlp_forward.1} parent=1 // pred_fallthru
      _
    // Predicated region
    $region10: #{mlp_forward.1} parent=1 // pred_check
      _
    $region11: #{mlp_forward.1} parent=1 // pred_check_branch
      %37 = sbr.rel (0) target = $region13
    $region12: #{mlp_forward.1} parent=1 // pred_region
      %39 = dma.done [#allocation3], 256
    $region13: #{mlp_forward.1} parent=1 // pred_fallthru
      _
    // Predicated region
    $region14: #{mlp_forward.1} parent=1 // pred_check
      _
    $region15: #{mlp_forward.1} parent=1 // pred_check_branch
      %41 = sbr.rel (0) target = $region17
    $region16: #{mlp_forward.1} parent=1 // pred_region
      %43 = dma.done [#allocation6], 4096
    $region17: #{mlp_forward.1} parent=1 // pred_fallthru
      _
    %v44 = vld [vmem:[#allocation2] sm:$0xff]
    %v45 = vld [vmem:[#allocation2 + $0x8] sm:$0xff]
    %v46 = vpack.c.bf16 %v45, %v44
    %v47 = vld [vmem:[#allocation5] sm:$0xf]
    %v48 = vld [vmem:[#allocation5 + $0x4] sm:$0xf]
    %v49 = vld [vmem:[#allocation5 + $0x8] sm:$0xf]
    %v50 = vld [vmem:[#allocation5 + $0xc] sm:$0xf]
    %v51 = vld [vmem:[#allocation5 + $0x10] sm:$0xf]
    %v52 = vld [vmem:[#allocation5 + $0x14] sm:$0xf]
    %v53 = vld [vmem:[#allocation5 + $0x18] sm:$0xf]
    %v54 = vld [vmem:[#allocation5 + $0x1c] sm:$0xf]
    %v55 = vld [vmem:[#allocation5 + $0x20] sm:$0xf]
    %v56 = vld [vmem:[#allocation5 + $0x24] sm:$0xf]
    %v57 = vld [vmem:[#allocation5 + $0x28] sm:$0xf]
    %v58 = vld [vmem:[#allocation5 + $0x2c] sm:$0xf]
    %v59 = vld [vmem:[#allocation5 + $0x30] sm:$0xf]
    %v60 = vld [vmem:[#allocation5 + $0x34] sm:$0xf]
    %v61 = vld [vmem:[#allocation5 + $0x38] sm:$0xf]
    %v62 = vld [vmem:[#allocation5 + $0x3c] sm:$0xf]
    %v79 = vunpack.c.l.b16 %v47
    %v80 = vunpack.c.l.b16 %v48
    %v81 = vunpack.c.l.b16 %v49
    %v82 = vunpack.c.l.b16 %v50
    %v83 = vunpack.c.l.b16 %v51
    %v84 = vunpack.c.l.b16 %v52
    %v85 = vunpack.c.l.b16 %v53
    %v86 = vunpack.c.l.b16 %v54
    %v87 = vunpack.c.l.b16 %v55
    %v88 = vunpack.c.l.b16 %v56
    %v89 = vunpack.c.l.b16 %v57
    %v90 = vunpack.c.l.b16 %v58
    %v91 = vunpack.c.l.b16 %v59
    %v92 = vunpack.c.l.b16 %v60
    %v93 = vunpack.c.l.b16 %v61
    %v94 = vunpack.c.l.b16 %v62
    %v95 = vpack.c.b16 %v80, %v79
    %v96 = vpack.c.b16 %v82, %v81
    %v97 = vpack.c.b16 %v84, %v83
    %v98 = vpack.c.b16 %v86, %v85
    %v99 = vpack.c.b16 %v88, %v87
    %v100 = vpack.c.b16 %v90, %v89
    %v101 = vpack.c.b16 %v92, %v91
    %v102 = vpack.c.b16 %v94, %v93
    %111 = vmatpush.bf16.msra.mxu0 %v102
    %112 = vmatpush.bf16.msra.mxu0 %v101
    %113 = vmatpush.bf16.msra.mxu0 %v100
    %114 = vmatpush.bf16.msra.mxu0 %v99
    %115 = vmatpush.bf16.msra.mxu0 %v98
    %116 = vmatpush.bf16.msra.mxu0 %v97
    %117 = vmatpush.bf16.msra.mxu0 %v96
    %118 = vmatpush.bf16.msra.mxu0 %v95
    %119 = vmatmul.bf16.gmra.mxu0 %v46
    %v120 = vpop.f32.mrf.mxu0
    %v121 = vadd.f32 0.0, %v120
    %v122 = vpop.f32.mrf.mxu0
    %v123 = vadd.f32 0.0, %v122
    %124 = vdwg.mxu0
    %v125 = vmax.f32 %v121, 0.0
    %v126 = vmax.f32 %v123, 0.0
    %v127 = vpack.c.bf16 %v126, %v125
    %s128 = scalar_lea.vmem [#allocation5], 64
    %v129 = vld [vmem:[%s128] sm:$0xf]
    %v130 = vld [vmem:[%s128 + $0x4] sm:$0xf]
    %v131 = vld [vmem:[%s128 + $0x8] sm:$0xf]
    %v132 = vld [vmem:[%s128 + $0xc] sm:$0xf]
    %v133 = vld [vmem:[%s128 + $0x10] sm:$0xf]
    %v134 = vld [vmem:[%s128 + $0x14] sm:$0xf]
    %v135 = vld [vmem:[%s128 + $0x18] sm:$0xf]
    %v136 = vld [vmem:[%s128 + $0x1c] sm:$0xf]
    %v137 = vld [vmem:[%s128 + $0x20] sm:$0xf]
    %v138 = vld [vmem:[%s128 + $0x24] sm:$0xf]
    %v139 = vld [vmem:[%s128 + $0x28] sm:$0xf]
    %v140 = vld [vmem:[%s128 + $0x2c] sm:$0xf]
    %v141 = vld [vmem:[%s128 + $0x30] sm:$0xf]
    %v142 = vld [vmem:[%s128 + $0x34] sm:$0xf]
    %v143 = vld [vmem:[%s128 + $0x38] sm:$0xf]
    %v144 = vld [vmem:[%s128 + $0x3c] sm:$0xf]
    %v161 = vunpack.c.l.b16 %v129
    %v162 = vunpack.c.l.b16 %v130
    %v163 = vunpack.c.l.b16 %v131
    %v164 = vunpack.c.l.b16 %v132
    %v165 = vunpack.c.l.b16 %v133
    %v166 = vunpack.c.l.b16 %v134
    %v167 = vunpack.c.l.b16 %v135
    %v168 = vunpack.c.l.b16 %v136
    %v169 = vunpack.c.l.b16 %v137
    %v170 = vunpack.c.l.b16 %v138
    %v171 = vunpack.c.l.b16 %v139
    %v172 = vunpack.c.l.b16 %v140
    %v173 = vunpack.c.l.b16 %v141
    %v174 = vunpack.c.l.b16 %v142
    %v175 = vunpack.c.l.b16 %v143
    %v176 = vunpack.c.l.b16 %v144
    %v177 = vpack.c.b16 %v162, %v161
    %v178 = vpack.c.b16 %v164, %v163
    %v179 = vpack.c.b16 %v166, %v165
    %v180 = vpack.c.b16 %v168, %v167
    %v181 = vpack.c.b16 %v170, %v169
    %v182 = vpack.c.b16 %v172, %v171
    %v183 = vpack.c.b16 %v174, %v173
    %v184 = vpack.c.b16 %v176, %v175
    %193 = vmatpush.bf16.msra.mxu0 %v184
    %194 = vmatpush.bf16.msra.mxu0 %v183
    %195 = vmatpush.bf16.msra.mxu0 %v182
    %196 = vmatpush.bf16.msra.mxu0 %v181
    %197 = vmatpush.bf16.msra.mxu0 %v180
    %198 = vmatpush.bf16.msra.mxu0 %v179
    %199 = vmatpush.bf16.msra.mxu0 %v178
    %200 = vmatpush.bf16.msra.mxu0 %v177
    %201 = vmatmul.bf16.gmra.mxu0 %v127
    %v202 = vpop.f32.mrf.mxu0
    %v203 = vadd.f32 0.0, %v202
    %v204 = vpop.f32.mrf.mxu0
    %v205 = vadd.f32 0.0, %v204
    %206 = vdwg.mxu0
    %v207 = vmax.f32 %v203, 0.0
    %v208 = vmax.f32 %v205, 0.0
    %v209 = vpack.c.bf16 %v208, %v207
    %s210 = scalar_lea.vmem [#allocation5], 128
    %v211 = vld [vmem:[%s210] sm:$0xf]
    %v212 = vld [vmem:[%s210 + $0x4] sm:$0xf]
    %v213 = vld [vmem:[%s210 + $0x8] sm:$0xf]
    %v214 = vld [vmem:[%s210 + $0xc] sm:$0xf]
    %v215 = vld [vmem:[%s210 + $0x10] sm:$0xf]
    %v216 = vld [vmem:[%s210 + $0x14] sm:$0xf]
    %v217 = vld [vmem:[%s210 + $0x18] sm:$0xf]
    %v218 = vld [vmem:[%s210 + $0x1c] sm:$0xf]
    %v219 = vld [vmem:[%s210 + $0x20] sm:$0xf]
    %v220 = vld [vmem:[%s210 + $0x24] sm:$0xf]
    %v221 = vld [vmem:[%s210 + $0x28] sm:$0xf]
    %v222 = vld [vmem:[%s210 + $0x2c] sm:$0xf]
    %v223 = vld [vmem:[%s210 + $0x30] sm:$0xf]
    %v224 = vld [vmem:[%s210 + $0x34] sm:$0xf]
    %v225 = vld [vmem:[%s210 + $0x38] sm:$0xf]
    %v226 = vld [vmem:[%s210 + $0x3c] sm:$0xf]
    %v243 = vunpack.c.l.b16 %v211
    %v244 = vunpack.c.l.b16 %v212
    %v245 = vunpack.c.l.b16 %v213
    %v246 = vunpack.c.l.b16 %v214
    %v247 = vunpack.c.l.b16 %v215
    %v248 = vunpack.c.l.b16 %v216
    %v249 = vunpack.c.l.b16 %v217
    %v250 = vunpack.c.l.b16 %v218
    %v251 = vunpack.c.l.b16 %v219
    %v252 = vunpack.c.l.b16 %v220
    %v253 = vunpack.c.l.b16 %v221
    %v254 = vunpack.c.l.b16 %v222
    %v255 = vunpack.c.l.b16 %v223
    %v256 = vunpack.c.l.b16 %v224
    %v257 = vunpack.c.l.b16 %v225
    %v258 = vunpack.c.l.b16 %v226
    %v259 = vpack.c.b16 %v244, %v243
    %v260 = vpack.c.b16 %v246, %v245
    %v261 = vpack.c.b16 %v248, %v247
    %v262 = vpack.c.b16 %v250, %v249
    %v263 = vpack.c.b16 %v252, %v251
    %v264 = vpack.c.b16 %v254, %v253
    %v265 = vpack.c.b16 %v256, %v255
    %v266 = vpack.c.b16 %v258, %v257
    %275 = vmatpush.bf16.msra.mxu0 %v266
    %276 = vmatpush.bf16.msra.mxu0 %v265
    %277 = vmatpush.bf16.msra.mxu0 %v264
    %278 = vmatpush.bf16.msra.mxu0 %v263
    %279 = vmatpush.bf16.msra.mxu0 %v262
    %280 = vmatpush.bf16.msra.mxu0 %v261
    %281 = vmatpush.bf16.msra.mxu0 %v260
    %282 = vmatpush.bf16.msra.mxu0 %v259
    %283 = vmatmul.bf16.gmra.mxu0 %v209
    %v284 = vpop.f32.mrf.mxu0
    %v285 = vadd.f32 0.0, %v284
    %v286 = vpop.f32.mrf.mxu0
    %v287 = vadd.f32 0.0, %v286
    %288 = vdwg.mxu0
    %v289 = vmax.f32 %v285, 0.0
    %v290 = vmax.f32 %v287, 0.0
    %v291 = vpack.c.bf16 %v290, %v289
    %s292 = scalar_lea.vmem [#allocation5], 192
    %v293 = vld [vmem:[%s292] sm:$0xf]
    %v294 = vld [vmem:[%s292 + $0x4] sm:$0xf]
    %v295 = vld [vmem:[%s292 + $0x8] sm:$0xf]
    %v296 = vld [vmem:[%s292 + $0xc] sm:$0xf]
    %v297 = vld [vmem:[%s292 + $0x10] sm:$0xf]
    %v298 = vld [vmem:[%s292 + $0x14] sm:$0xf]
    %v299 = vld [vmem:[%s292 + $0x18] sm:$0xf]
    %v300 = vld [vmem:[%s292 + $0x1c] sm:$0xf]
    %v301 = vld [vmem:[%s292 + $0x20] sm:$0xf]
    %v302 = vld [vmem:[%s292 + $0x24] sm:$0xf]
    %v303 = vld [vmem:[%s292 + $0x28] sm:$0xf]
    %v304 = vld [vmem:[%s292 + $0x2c] sm:$0xf]
    %v305 = vld [vmem:[%s292 + $0x30] sm:$0xf]
    %v306 = vld [vmem:[%s292 + $0x34] sm:$0xf]
    %v307 = vld [vmem:[%s292 + $0x38] sm:$0xf]
    %v308 = vld [vmem:[%s292 + $0x3c] sm:$0xf]
    %v325 = vunpack.c.l.b16 %v293
    %v326 = vunpack.c.l.b16 %v294
    %v327 = vunpack.c.l.b16 %v295
    %v328 = vunpack.c.l.b16 %v296
    %v329 = vunpack.c.l.b16 %v297
    %v330 = vunpack.c.l.b16 %v298
    %v331 = vunpack.c.l.b16 %v299
    %v332 = vunpack.c.l.b16 %v300
    %v333 = vunpack.c.l.b16 %v301
    %v334 = vunpack.c.l.b16 %v302
    %v335 = vunpack.c.l.b16 %v303
    %v336 = vunpack.c.l.b16 %v304
    %v337 = vunpack.c.l.b16 %v305
    %v338 = vunpack.c.l.b16 %v306
    %v339 = vunpack.c.l.b16 %v307
    %v340 = vunpack.c.l.b16 %v308
    %v341 = vpack.c.b16 %v326, %v325
    %v342 = vpack.c.b16 %v328, %v327
    %v343 = vpack.c.b16 %v330, %v329
    %v344 = vpack.c.b16 %v332, %v331
    %v345 = vpack.c.b16 %v334, %v333
    %v346 = vpack.c.b16 %v336, %v335
    %v347 = vpack.c.b16 %v338, %v337
    %v348 = vpack.c.b16 %v340, %v339
    %357 = vmatpush.bf16.msra.mxu0 %v348
    %358 = vmatpush.bf16.msra.mxu0 %v347
    %359 = vmatpush.bf16.msra.mxu0 %v346
    %360 = vmatpush.bf16.msra.mxu0 %v345
    %361 = vmatpush.bf16.msra.mxu0 %v344
    %362 = vmatpush.bf16.msra.mxu0 %v343
    %363 = vmatpush.bf16.msra.mxu0 %v342
    %364 = vmatpush.bf16.msra.mxu0 %v341
    %365 = vmatmul.bf16.gmra.mxu0 %v291
    %v366 = vpop.f32.mrf.mxu0
    %v367 = vadd.f32 0.0, %v366
    %v368 = vpop.f32.mrf.mxu0
    %v369 = vadd.f32 0.0, %v368
    %370 = vdwg.mxu0
    %v371 = vmax.f32 %v367, 0.0
    %v372 = vmax.f32 %v369, 0.0
    %v373 = vpack.c.bf16 %v371, %v371
    %v374 = vpack.c.bf16 %v372, %v372
    %v375 = vunpack.c.l.bf16 %v373
    %v376 = vunpack.c.l.bf16 %v374
    %377 = vst [vmem:[#allocation7] sm:$0xff] %v375
    %378 = vst [vmem:[#allocation7 + $0x8] sm:$0xff] %v376
    // Predicated region
    $region18: #{mlp_forward.1} parent=1 // pred_check
      _
    $region19: #{mlp_forward.1} parent=1 // pred_check_branch
      %380 = sbr.rel (0) target = $region21
    $region20: #{mlp_forward.1} parent=1 // pred_region
      %382 = vsyncadd [#allocation4], 0
      %s383 = sshll.u32 [#allocation7], 4
      %s384 = int_to_ptr.vmem [resolvable:$true] %s383
      %s385 = sshll.u32 %s2, 4
      %s386 = int_to_ptr.hbm [resolvable:$true] %s385
      %391 = dma.vmem_to_hbm [thread:$0]  %s384, 256, %s386, [#allocation4], 128, 128, 8
    $region21: #{mlp_forward.1} parent=1 // pred_fallthru
      _
    // Predicated region
    $region22: #{mlp_forward.1} parent=1 // pred_check
      _
    $region23: #{mlp_forward.1} parent=1 // pred_check_branch
      %393 = sbr.rel (0) target = $region25
    $region24: #{mlp_forward.1} parent=1 // pred_region
      %395 = dma.done [#allocation4], 256
    $region25: #{mlp_forward.1} parent=1 // pred_fallthru
      _
    %396 = vsyncpa [#allocation3], 1
    %397 = vsyncpa [#allocation6], 1
    %398 = vsyncpa [#allocation4], 1

</llo_original>
